<compile_context>
chip_gen: v7x
topology: tpu7x:2x2x1
jax: 0.10.0
libtpu: 0.0.40
codegen_flags: <defaults>
</compile_context>

<pallas_src>
import math

import jax
import jax.numpy as jnp
from jax import lax
from jax.experimental import pallas as pl
from jax.experimental.pallas import tpu as pltpu

_EPS = 1e-12                       # F.normalize default eps


def _round_down(x, align):
    return max(align, (x // align) * align)


def _vmem_budgets():
    """(vmem_capacity, vmem_limit_bytes, tile_budget_bytes) for this chip."""
    cap = 64 * 1024 * 1024          # conservative default: v7x per-core VMEM
    try:
        cap = int(pltpu.get_tpu_info().vmem_capacity_bytes)
    except Exception:
        pass
    limit = min(int(cap * 0.85), cap - (8 << 20))
    tile_budget = int(cap * 0.45)
    return cap, limit, tile_budget


def _choose_tiles(B, C, D, w_isz, x_isz, out_isz, cap, tile_budget):
    """Pick (batch_tile, class_tile) against a conservative VMEM budget."""
    # Large batch tile: with weight resident over the inner batch axis, a big
    # TB mainly shrinks per-step overhead and output-tile granularity.
    max_tb = 1024 if cap >= (96 << 20) else 512
    tb = B if B <= max_tb else _round_down(max_tb, 8)

    # Resident-ish / streamed small blocks (double-buffered): x, label, inv_x.
    fixed = 2 * tb * D * x_isz + 2 * tb * 4 + 2 * tb * 4
    # Per class column: weight tile (2 bufs), inv_w (2 bufs), out tile (2 bufs).
    per_tc = 2 * D * w_isz + 2 * 4 + 2 * tb * out_isz
    max_tc = max(128, (tile_budget - fixed) // per_tc)

    if C <= max_tc:
        tc = C                       # whole class axis in one lane-dense block
    elif max_tc >= 256:
        tc = _round_down(max_tc, 256)
    else:
        tc = 128
    return tb, tc


def _make_arc_margin_kernel(s, m, class_tile, num_classes):
    cos_m = math.cos(m)
    sin_m = math.sin(m)
    th = math.cos(math.pi - m)
    mm = math.sin(math.pi - m) * m
    mask_tail = (num_classes % class_tile) != 0

    def kernel(x_ref, w_ref, inv_x_ref, inv_w_ref, label_ref, out_ref):
        x = x_ref[...]                       # (TB, D)   mxu dtype
        w = w_ref[...]                       # (TC, D)   mxu dtype
        inv_x = inv_x_ref[...]               # (TB, 1)   f32
        inv_w = inv_w_ref[...]               # (1, TC)   f32
        lbl = label_ref[...]                 # (TB, 1)   int32

        tb = x.shape[0]
        tc = w.shape[0]
        j = pl.program_id(0)                 # class-tile index (outer, parallel)

        # ---- cosine: raw MXU matmul, post-scaled by precomputed inv norms --
        raw = lax.dot_general(
            x, w,
            dimension_numbers=(((1,), (1,)), ((), ())),
            preferred_element_type=jnp.float32)                       # (TB, TC)
        cosine = raw * inv_x * inv_w

        col = lax.broadcasted_iota(jnp.int32, (tb, tc), 1)
        if mask_tail:
            # Zero out the unspecified padded lanes of a partial last tile so
            # no NaN/Inf can leak into reductions or the writeback.
            cosine = jnp.where(col < (num_classes - j * class_tile), cosine, 0.0)

        # ---- arc margin, applied only to the target column of each row -----
        lbl_local = lbl - j * class_tile                               # (TB, 1)
        one_hot = col == lbl_local                                     # (TB, TC)

        cos_t = jnp.sum(jnp.where(one_hot, cosine, 0.0),
                        axis=-1, keepdims=True)                        # (TB, 1)
        sin_t = jnp.sqrt(jnp.clip(1.0 - cos_t * cos_t, 0.0, 1.0))
        phi_t = cos_t * cos_m - sin_t * sin_m
        phi_t = jnp.where(cos_t > th, phi_t, cos_t - mm)               # (TB, 1)

        out = jnp.where(one_hot, phi_t, cosine) * s
        out_ref[...] = out.astype(out_ref.dtype)

    return kernel


def arc_margin_product(x, weight, label, s=32.0, m=0.5, *,
                       mxu_dtype=jnp.bfloat16, out_dtype=jnp.float32,
                       batch_tile=None, class_tile=None):
    """ArcMarginProduct forward.

    x: (B, D), weight: (C, D), label: (B,) int -> (B, C) out_dtype.
    """
    B, D = x.shape
    C, D2 = weight.shape
    assert D == D2
    label2d = label.reshape(B, 1).astype(jnp.int32)

    # ---- inverse row norms, precomputed once in f32 (hoisted out of kernel) -
    eps_sq = _EPS * _EPS
    x32 = x.astype(jnp.float32)
    w32 = weight.astype(jnp.float32)
    inv_x = lax.rsqrt(jnp.maximum(
        jnp.sum(x32 * x32, axis=1, keepdims=True), eps_sq))            # (B, 1)
    inv_w = lax.rsqrt(jnp.maximum(
        jnp.sum(w32 * w32, axis=1, keepdims=True), eps_sq)).reshape(1, C)

    # ---- MXU operands (bf16 by default: half the weight HBM stream) --------
    if mxu_dtype is None:
        x_mxu, w_mxu = x, weight
    else:
        x_mxu = x.astype(mxu_dtype)
        w_mxu = weight.astype(mxu_dtype)

    cap, vmem_limit, tile_budget = _vmem_budgets()
    tb_auto, tc_auto = _choose_tiles(
        B, C, D,
        jnp.dtype(w_mxu.dtype).itemsize, jnp.dtype(x_mxu.dtype).itemsize,
        jnp.dtype(out_dtype).itemsize, cap, tile_budget)
    tb = batch_tile if batch_tile is not None else tb_auto
    tc = class_tile if class_tile is not None else tc_auto

    kernel = _make_arc_margin_kernel(s, m, tc, C)
    # Class axis is the OUTER, "parallel" axis so a megacore split lands on it
    # (each core streams half of W); batch is the inner "arbitrary" axis and
    # the weight tile stays resident across it.
    grid = (pl.cdiv(C, tc), pl.cdiv(B, tb))

    return pl.pallas_call(
        kernel,
        out_shape=jax.ShapeDtypeStruct((B, C), out_dtype),
        grid_spec=pltpu.PrefetchScalarGridSpec(
            num_scalar_prefetch=0,
            grid=grid,
            in_specs=[
                pl.BlockSpec((tb, D), lambda j, i: (i, 0)),   # x: streamed
                pl.BlockSpec((tc, D), lambda j, i: (j, 0)),   # weight: resident over i
                pl.BlockSpec((tb, 1), lambda j, i: (i, 0)),   # inv_x
                pl.BlockSpec((1, tc), lambda j, i: (0, j)),   # inv_w: resident over i
                pl.BlockSpec((tb, 1), lambda j, i: (i, 0)),   # label
            ],
            out_specs=pl.BlockSpec((tb, tc), lambda j, i: (i, j)),
        ),
        compiler_params=pltpu.CompilerParams(
            dimension_semantics=("parallel", "arbitrary"),
            vmem_limit_bytes=vmem_limit,
        ),
    )(x_mxu, w_mxu, inv_x, inv_w, label2d)


def _reference(x, weight, label, s=32.0, m=0.5):
    """Pure-JAX reference mirroring the PyTorch forward."""
    cos_m, sin_m = math.cos(m), math.sin(m)
    th, mm = math.cos(math.pi - m), math.sin(math.pi - m) * m
    xn = x / jnp.maximum(jnp.linalg.norm(x, axis=1, keepdims=True), 1e-12)
    wn = weight / jnp.maximum(jnp.linalg.norm(weight, axis=1, keepdims=True), 1e-12)
    cosine = xn @ wn.T
    sine = jnp.sqrt(jnp.clip(1.0 - cosine ** 2, 0.0, 1.0))
    phi = cosine * cos_m - sine * sin_m
    phi = jnp.where(cosine > th, phi, cosine - mm)
    one_hot = jax.nn.one_hot(label, weight.shape[0], dtype=cosine.dtype)
    return (one_hot * phi + (1.0 - one_hot) * cosine) * s


def _xavier_uniform(key, out_features, in_features):
    bound = math.sqrt(6.0 / (in_features + out_features))
    return jax.random.uniform(key, (out_features, in_features),
                              minval=-bound, maxval=bound, dtype=jnp.float32)


if __name__ == "__main__":
    # Small, deterministic problem: batch=16, in_features=64, out_features=256.
    B, in_features, out_features = 16, 64, 256
    s, m = 32.0, 0.5

    key = jax.random.PRNGKey(0)
    kx, kw, kl, kw2, kl2 = jax.random.split(key, 5)

    x = jax.random.normal(kx, (B, in_features), dtype=jnp.float32)
    weight = _xavier_uniform(kw, out_features, in_features)
    label = jax.random.randint(kl, (B,), 0, out_features, dtype=jnp.int32)

    ref = _reference(x, weight, label, s=s, m=m)

    # 1) f32 MXU path, auto tiles -> tight tolerance.
    out_f32 = jax.block_until_ready(
        arc_margin_product(x, weight, label, s=s, m=m, mxu_dtype=jnp.float32))
    assert out_f32.shape == (B, out_features)
    assert jnp.allclose(out_f32, ref, atol=5e-4, rtol=1e-4), (
        f"f32 max abs err = {jnp.max(jnp.abs(out_f32 - ref))}")

    # 2) Forced multi-tile grid (batch + class tiling, local label offset).
    out_tiled = jax.block_until_ready(
        arc_margin_product(x, weight, label, s=s, m=m, mxu_dtype=jnp.float32,
                           batch_tile=8, class_tile=128))
    assert jnp.allclose(out_tiled, ref, atol=5e-4, rtol=1e-4), (
        f"tiled max abs err = {jnp.max(jnp.abs(out_tiled - ref))}")

    # 3) Default path: bf16 MXU operands (norms/epilogue f32) -> loose tolerance.
    out_bf16 = jax.block_until_ready(
        arc_margin_product(x, weight, label, s=s, m=m))
    assert jnp.allclose(out_bf16, ref, atol=0.5, rtol=0.0), (
        f"bf16 max abs err = {jnp.max(jnp.abs(out_bf16 - ref))}")

    # 4) Partial last class tile (C % class_tile != 0) exercises the explicit
    #    tail-column masking.
    C2 = 200
    weight2 = _xavier_uniform(kw2, C2, in_features)
    label2 = jax.random.randint(kl2, (B,), 0, C2, dtype=jnp.int32)
    ref2 = _reference(x, weight2, label2, s=s, m=m)
    out_tail = jax.block_until_ready(
        arc_margin_product(x, weight2, label2, s=s, m=m, mxu_dtype=jnp.float32,
                           batch_tile=8, class_tile=128))
    assert out_tail.shape == (B, C2)
    assert jnp.allclose(out_tail, ref2, atol=5e-4, rtol=1e-4), (
        f"tail max abs err = {jnp.max(jnp.abs(out_tail - ref2))}")

    print("KERNEL_OK")
</pallas_src>

<mosaic_0001>
module attributes {stable_mosaic.version = 11 : i64} {
  func.func @kernel(%arg0: i32, %arg1: i32, %arg2: memref<16x64xf32, #tpu.memory_space<vmem>>, %arg3: memref<256x64xf32, #tpu.memory_space<vmem>>, %arg4: memref<16x1xf32, #tpu.memory_space<vmem>>, %arg5: memref<1x256xf32, #tpu.memory_space<vmem>>, %arg6: memref<16x1xi32, #tpu.memory_space<vmem>>, %arg7: memref<16x256xf32, #tpu.memory_space<vmem>>) attributes {dimension_semantics = [#tpu.dimension_semantics<parallel>, #tpu.dimension_semantics<arbitrary>], iteration_bounds = array<i64: 1, 1>, scalar_prefetch = 0 : i64, scratch_operands = 0 : i64, tpu.core_type = #tpu.core_type<tc>, window_params = [{transform_indices = @transform_0, window_bounds = array<i64: 16, 64>}, {transform_indices = @transform_1, window_bounds = array<i64: 256, 64>}, {transform_indices = @transform_2, window_bounds = array<i64: 16, 1>}, {transform_indices = @transform_3, window_bounds = array<i64: 1, 256>}, {transform_indices = @transform_4, window_bounds = array<i64: 16, 1>}, {transform_indices = @transform_5, window_bounds = array<i64: 16, 256>}]} {
    %c0 = arith.constant 0 : index
    %c0_0 = arith.constant 0 : index
    %0 = vector.load %arg2[%c0, %c0_0] : memref<16x64xf32, #tpu.memory_space<vmem>>, vector<16x64xf32>
    %c0_1 = arith.constant 0 : index
    %c0_2 = arith.constant 0 : index
    %1 = vector.load %arg3[%c0_1, %c0_2] : memref<256x64xf32, #tpu.memory_space<vmem>>, vector<256x64xf32>
    %c0_3 = arith.constant 0 : index
    %c0_4 = arith.constant 0 : index
    %2 = vector.load %arg4[%c0_3, %c0_4] : memref<16x1xf32, #tpu.memory_space<vmem>>, vector<16x1xf32>
    %c0_5 = arith.constant 0 : index
    %c0_6 = arith.constant 0 : index
    %3 = vector.load %arg5[%c0_5, %c0_6] : memref<1x256xf32, #tpu.memory_space<vmem>>, vector<1x256xf32>
    %c0_7 = arith.constant 0 : index
    %c0_8 = arith.constant 0 : index
    %4 = vector.load %arg6[%c0_7, %c0_8] : memref<16x1xi32, #tpu.memory_space<vmem>>, vector<16x1xi32>
    %cst = arith.constant dense<0.000000e+00> : vector<16x256xf32>
    %5 = tpu.matmul %0, %1, %cst {dimension_numbers = #tpu.dot_dimension_numbers<[1], [1], [0], [0], [0, 0, 1, 0], [], []>} : vector<16x64xf32>, vector<256x64xf32>, vector<16x256xf32> -> vector<16x256xf32>
    %6 = vector.broadcast %2 : vector<16x1xf32> to vector<16x256xf32>
    %7 = arith.mulf %5, %6 : vector<16x256xf32>
    %8 = vector.broadcast %3 : vector<1x256xf32> to vector<16x256xf32>
    %9 = arith.mulf %7, %8 : vector<16x256xf32>
    %10 = tpu.iota {dimensions = array<i32: 1>} : vector<16x256xi32>
    %c256_i32 = arith.constant 256 : i32
    %11 = arith.muli %arg0, %c256_i32 : i32
    %12 = vector.broadcast %11 : i32 to vector<16x1xi32>
    %13 = arith.subi %4, %12 : vector<16x1xi32>
    %14 = vector.broadcast %13 : vector<16x1xi32> to vector<16x256xi32>
    %15 = arith.cmpi eq, %10, %14 : vector<16x256xi32>
    %cst_9 = arith.constant 0.000000e+00 : f32
    %16 = vector.broadcast %cst_9 : f32 to vector<16x256xf32>
    %17 = arith.select %15, %9, %16 : vector<16x256xi1>, vector<16x256xf32>
    %cst_10 = arith.constant dense<0.000000e+00> : vector<16xf32>
    %18 = vector.multi_reduction <add>, %17, %cst_10 [1] : vector<16x256xf32> to vector<16xf32>
    %19 = vector.shape_cast %18 : vector<16xf32> to vector<16x1xf32>
    %20 = arith.mulf %19, %19 : vector<16x1xf32>
    %cst_11 = arith.constant 1.000000e+00 : f32
    %21 = vector.broadcast %cst_11 : f32 to vector<16x1xf32>
    %22 = arith.subf %21, %20 : vector<16x1xf32>
    %cst_12 = arith.constant 0.000000e+00 : f32
    %cst_13 = arith.constant 1.000000e+00 : f32
    %23 = vector.broadcast %cst_12 : f32 to vector<16x1xf32>
    %24 = arith.maximumf %23, %22 : vector<16x1xf32>
    %25 = vector.broadcast %cst_13 : f32 to vector<16x1xf32>
    %26 = arith.minimumf %25, %24 : vector<16x1xf32>
    %27 = math.sqrt %26 : vector<16x1xf32>
    %cst_14 = arith.constant 0.87758255 : f32
    %28 = vector.broadcast %cst_14 : f32 to vector<16x1xf32>
    %29 = arith.mulf %19, %28 : vector<16x1xf32>
    %cst_15 = arith.constant 0.47942555 : f32
    %30 = vector.broadcast %cst_15 : f32 to vector<16x1xf32>
    %31 = arith.mulf %27, %30 : vector<16x1xf32>
    %32 = arith.subf %29, %31 : vector<16x1xf32>
    %cst_16 = arith.constant -0.87758255 : f32
    %33 = vector.broadcast %cst_16 : f32 to vector<16x1xf32>
    %34 = arith.cmpf ogt, %19, %33 : vector<16x1xf32>
    %cst_17 = arith.constant 0.239712775 : f32
    %35 = vector.broadcast %cst_17 : f32 to vector<16x1xf32>
    %36 = arith.subf %19, %35 : vector<16x1xf32>
    %37 = arith.select %34, %32, %36 : vector<16x1xi1>, vector<16x1xf32>
    %38 = vector.shape_cast %37 : vector<16x1xf32> to vector<16x1xf32>
    %39 = vector.broadcast %38 : vector<16x1xf32> to vector<16x256xf32>
    %40 = arith.select %15, %39, %9 : vector<16x256xi1>, vector<16x256xf32>
    %cst_18 = arith.constant 3.200000e+01 : f32
    %41 = vector.broadcast %cst_18 : f32 to vector<16x256xf32>
    %42 = arith.mulf %40, %41 : vector<16x256xf32>
    %c0_19 = arith.constant 0 : index
    %c0_20 = arith.constant 0 : index
    %43 = vector.load %arg7[%c0_19, %c0_20] : memref<16x256xf32, #tpu.memory_space<vmem>>, vector<16x256xf32>
    tpu.vector_store %arg7[%c0_19, %c0_20], %42 {strides = array<i32>} : memref<16x256xf32, #tpu.memory_space<vmem>>, vector<16x256xf32>,
    return
  }
  func.func @transform_0(%arg0: i32, %arg1: i32) -> (i32, i32) {
    %c0_i32 = arith.constant 0 : i32
    %c0_i32_0 = arith.constant 0 : i32
    return %arg1, %c0_i32 : i32, i32
  }
  func.func @transform_1(%arg0: i32, %arg1: i32) -> (i32, i32) {
    %c0_i32 = arith.constant 0 : i32
    %c0_i32_0 = arith.constant 0 : i32
    return %arg0, %c0_i32 : i32, i32
  }
  func.func @transform_2(%arg0: i32, %arg1: i32) -> (i32, i32) {
    %c0_i32 = arith.constant 0 : i32
    %c0_i32_0 = arith.constant 0 : i32
    return %arg1, %c0_i32 : i32, i32
  }
  func.func @transform_3(%arg0: i32, %arg1: i32) -> (i32, i32) {
    %c0_i32 = arith.constant 0 : i32
    %c0_i32_0 = arith.constant 0 : i32
    return %c0_i32, %arg0 : i32, i32
  }
  func.func @transform_4(%arg0: i32, %arg1: i32) -> (i32, i32) {
    %c0_i32 = arith.constant 0 : i32
    %c0_i32_0 = arith.constant 0 : i32
    return %arg1, %c0_i32 : i32, i32
  }
  func.func @transform_5(%arg0: i32, %arg1: i32) -> (i32, i32) {
    %c0_i32 = arith.constant 0 : i32
    return %arg1, %arg0 : i32, i32
  }
}

</mosaic_0001>

<llo_original>
// kernel: tpu_custom_call.1
$region0: #{tpu_custom_call.1}
  #allocation0 [shape = 'u32[]', space=smem, size = 0x4, offset = 0x4, fixed_abs, tag = 'smem constant byte address 0x4 - core index']
  #allocation1 [shape = 'u32[144,128]{1,0:T(1,128)}', space=vmem, size = 0x12000, scoped, tag = 'internal scratch']
  %s0 = inlined_call_operand.vmem [shape: f32[16,64], index: 0, kind: input, shape index: {}]
  %s1 = inlined_call_operand.vmem [shape: f32[256,64], index: 1, kind: input, shape index: {}]
  %s2 = inlined_call_operand.vmem [shape: f32[16,1], index: 2, kind: input, shape index: {}]
  %s3 = inlined_call_operand.vmem [shape: f32[1,256], index: 3, kind: input, shape index: {}]
  %s4 = inlined_call_operand.vmem [shape: s32[16,1], index: 4, kind: input, shape index: {}]
  %s5 = inlined_call_operand.hbm [shape: f32[16,256], index: 5, kind: output, shape index: {}]
  %s6 = sld [smem:[#allocation0]]
  $region30: #{tpu_custom_call.1} parent=0
    _
  %s8 = ssub.s32 1, %s6
  %s9 = scalar_select 0, %s8, %s6
  $region1: #{tpu_custom_call.1} parent=0
    #allocation2 [shape = 'u8[16384]{0}', space=vmem, size = 0x4000, scoped, tag = 'output window, operand 0, single buffered']
    #allocation3 [shape = 's32[1]{0}', space=sflag, size = 0x4, scoped, tag = 'scoped memory for tpu_custom_call.1']
    %10 = vsyncpa [#allocation3], 0
    // Predicated region
    $region2: #{tpu_custom_call.1} parent=1 // pred_check
      _
    $region3: #{tpu_custom_call.1} parent=1 // pred_check_branch
      %12 = sbr.rel (0) target = $region5
    $region4: #{tpu_custom_call.1} parent=1 // pred_region
      _
    $region5: #{tpu_custom_call.1} parent=1 // pred_fallthru
      _
    // Predicated region
    $region6: #{tpu_custom_call.1} parent=1 // pred_check
      _
    $region7: #{tpu_custom_call.1} parent=1 // pred_check_branch
      %14 = sbr.rel (0) target = $region9
    $region8: #{tpu_custom_call.1} parent=1 // pred_region
      _
    $region9: #{tpu_custom_call.1} parent=1 // pred_fallthru
      _
    // Predicated region
    $region10: #{tpu_custom_call.1} parent=1 // pred_check
      _
    $region11: #{tpu_custom_call.1} parent=1 // pred_check_branch
      %16 = sbr.rel (0) target = $region13
    $region12: #{tpu_custom_call.1} parent=1 // pred_region
      _
    $region13: #{tpu_custom_call.1} parent=1 // pred_fallthru
      _
    // Predicated region
    $region14: #{tpu_custom_call.1} parent=1 // pred_check
      _
    $region15: #{tpu_custom_call.1} parent=1 // pred_check_branch
      %18 = sbr.rel (0) target = $region17
    $region16: #{tpu_custom_call.1} parent=1 // pred_region
      _
    $region17: #{tpu_custom_call.1} parent=1 // pred_fallthru
      _
    // Predicated region
    $region18: #{tpu_custom_call.1} parent=1 // pred_check
      _
    $region19: #{tpu_custom_call.1} parent=1 // pred_check_branch
      %20 = sbr.rel (0) target = $region21
    $region20: #{tpu_custom_call.1} parent=1 // pred_region
      _
    $region21: #{tpu_custom_call.1} parent=1 // pred_fallthru
      _
    %v21 = vld [vmem:[%s0] sm:$0xff]
    %v22 = vld [vmem:[%s0 + $0x8] sm:$0xff]
    %v23 = vld [vmem:[%s1] sm:$0xff]
    %v24 = vld [vmem:[%s1 + $0x8] sm:$0xff]
    %v25 = vld [vmem:[%s1 + $0x10] sm:$0xff]
    %v26 = vld [vmem:[%s1 + $0x18] sm:$0xff]
    %v27 = vld [vmem:[%s1 + $0x20] sm:$0xff]
    %v28 = vld [vmem:[%s1 + $0x28] sm:$0xff]
    %v29 = vld [vmem:[%s1 + $0x30] sm:$0xff]
    %v30 = vld [vmem:[%s1 + $0x38] sm:$0xff]
    %v31 = vld [vmem:[%s1 + $0x40] sm:$0xff]
    %v32 = vld [vmem:[%s1 + $0x48] sm:$0xff]
    %v33 = vld [vmem:[%s1 + $0x50] sm:$0xff]
    %v34 = vld [vmem:[%s1 + $0x58] sm:$0xff]
    %v35 = vld [vmem:[%s1 + $0x60] sm:$0xff]
    %v36 = vld [vmem:[%s1 + $0x68] sm:$0xff]
    %v37 = vld [vmem:[%s1 + $0x70] sm:$0xff]
    %v38 = vld [vmem:[%s1 + $0x78] sm:$0xff]
    %v39 = vld [vmem:[%s1 + $0x80] sm:$0xff]
    %v40 = vld [vmem:[%s1 + $0x88] sm:$0xff]
    %v41 = vld [vmem:[%s1 + $0x90] sm:$0xff]
    %v42 = vld [vmem:[%s1 + $0x98] sm:$0xff]
    %v43 = vld [vmem:[%s1 + $0xa0] sm:$0xff]
    %v44 = vld [vmem:[%s1 + $0xa8] sm:$0xff]
    %v45 = vld [vmem:[%s1 + $0xb0] sm:$0xff]
    %v46 = vld [vmem:[%s1 + $0xb8] sm:$0xff]
    %v47 = vld [vmem:[%s1 + $0xc0] sm:$0xff]
    %v48 = vld [vmem:[%s1 + $0xc8] sm:$0xff]
    %v49 = vld [vmem:[%s1 + $0xd0] sm:$0xff]
    %v50 = vld [vmem:[%s1 + $0xd8] sm:$0xff]
    %v51 = vld [vmem:[%s1 + $0xe0] sm:$0xff]
    %v52 = vld [vmem:[%s1 + $0xe8] sm:$0xff]
    %v53 = vld [vmem:[%s1 + $0xf0] sm:$0xff]
    %v54 = vld [vmem:[%s1 + $0xf8] sm:$0xff]
    %v55 = vld [vmem:[%s2] sm:$0xff]
    %v56 = vld [vmem:[%s2 + $0x8] sm:$0xff]
    %v57 = vld [vmem:[%s3] sm:$0x3]
    %v58 = vld [vmem:[%s4] sm:$0xff]
    %v59 = vld [vmem:[%s4 + $0x8] sm:$0xff]
    %vm60 = vcmask 523264
    %v62 = vsel %vm60, %v21, 0
    %v65 = vsel %vm60, %v22, 0
    %v68 = vsel %vm60, %v23, 0
    %v71 = vsel %vm60, %v24, 0
    %v74 = vsel %vm60, %v25, 0
    %v77 = vsel %vm60, %v26, 0
    %v80 = vsel %vm60, %v27, 0
    %v83 = vsel %vm60, %v28, 0
    %v86 = vsel %vm60, %v29, 0
    %v89 = vsel %vm60, %v30, 0
    %v92 = vsel %vm60, %v31, 0
    %v95 = vsel %vm60, %v32, 0
    %v98 = vsel %vm60, %v33, 0
    %v101 = vsel %vm60, %v34, 0
    %v104 = vsel %vm60, %v35, 0
    %v107 = vsel %vm60, %v36, 0
    %v110 = vsel %vm60, %v37, 0
    %v113 = vsel %vm60, %v38, 0
    %v116 = vsel %vm60, %v39, 0
    %v119 = vsel %vm60, %v40, 0
    %v122 = vsel %vm60, %v41, 0
    %v125 = vsel %vm60, %v42, 0
    %v128 = vsel %vm60, %v43, 0
    %v131 = vsel %vm60, %v44, 0
    %v134 = vsel %vm60, %v45, 0
    %v137 = vsel %vm60, %v46, 0
    %v140 = vsel %vm60, %v47, 0
    %v143 = vsel %vm60, %v48, 0
    %v146 = vsel %vm60, %v49, 0
    %v149 = vsel %vm60, %v50, 0
    %v152 = vsel %vm60, %v51, 0
    %v155 = vsel %vm60, %v52, 0
    %v158 = vsel %vm60, %v53, 0
    %v161 = vsel %vm60, %v54, 0
    %163 = vmatprep.subr.mxu0 0.0
    %164 = vmatpush1.xpose.msra.mxu0 %v68
    %165 = vmatprep.subr.mxu0 0.0
    %166 = vmatpush1.xpose.msra.mxu0 %v71
    %167 = vmatprep.subr.mxu0 0.0
    %168 = vmatpush1.xpose.msra.mxu0 %v74
    %169 = vmatprep.subr.mxu0 0.0
    %170 = vmatpush1.xpose.msra.mxu0 %v77
    %171 = vmatprep.subr.mxu0 0.0
    %172 = vmatpush1.xpose.msra.mxu0 %v80
    %173 = vmatprep.subr.mxu0 0.0
    %174 = vmatpush1.xpose.msra.mxu0 %v83
    %175 = vmatprep.subr.mxu0 0.0
    %176 = vmatpush1.xpose.msra.mxu0 %v86
    %177 = vmatprep.subr.mxu0 0.0
    %178 = vmatpush1.xpose.msra.mxu0 %v89
    %179 = vmatprep.subr.mxu0 0.0
    %180 = vmatpush1.xpose.msra.mxu0 %v92
    %181 = vmatprep.subr.mxu0 0.0
    %182 = vmatpush1.xpose.msra.mxu0 %v95
    %183 = vmatprep.subr.mxu0 0.0
    %184 = vmatpush1.xpose.msra.mxu0 %v98
    %185 = vmatprep.subr.mxu0 0.0
    %186 = vmatpush1.xpose.msra.mxu0 %v101
    %187 = vmatprep.subr.mxu0 0.0
    %188 = vmatpush1.xpose.msra.mxu0 %v104
    %189 = vmatprep.subr.mxu0 0.0
    %190 = vmatpush1.xpose.msra.mxu0 %v107
    %191 = vmatprep.subr.mxu0 0.0
    %192 = vmatpush1.xpose.msra.mxu0 %v110
    %193 = vmatprep.subr.mxu0 0.0
    %194 = vmatpush1.xpose.msra.mxu0 %v113
    %195 = vmatprep.subr.mxu0 0.0
    %196 = vmatpush1.xpose.msra.mxu0 %v116
    %197 = vmatprep.subr.mxu0 0.0
    %198 = vmatpush1.xpose.msra.mxu0 %v119
    %199 = vmatprep.subr.mxu0 0.0
    %200 = vmatpush1.xpose.msra.mxu0 %v122
    %201 = vmatprep.subr.mxu0 0.0
    %202 = vmatpush1.xpose.msra.mxu0 %v125
    %203 = vmatprep.subr.mxu0 0.0
    %204 = vmatpush1.xpose.msra.mxu0 %v128
    %205 = vmatprep.subr.mxu0 0.0
    %206 = vmatpush1.xpose.msra.mxu0 %v131
    %207 = vmatprep.subr.mxu0 0.0
    %208 = vmatpush1.xpose.msra.mxu0 %v134
    %209 = vmatprep.subr.mxu0 0.0
    %210 = vmatpush1.xpose.msra.mxu0 %v137
    %211 = vmatprep.subr.mxu0 0.0
    %212 = vmatpush1.xpose.msra.mxu0 %v140
    %213 = vmatprep.subr.mxu0 0.0
    %214 = vmatpush1.xpose.msra.mxu0 %v143
    %215 = vmatprep.subr.mxu0 0.0
    %216 = vmatpush1.xpose.msra.mxu0 %v146
    %217 = vmatprep.subr.mxu0 0.0
    %218 = vmatpush1.xpose.msra.mxu0 %v149
    %219 = vmatprep.subr.mxu0 0.0
    %220 = vmatpush1.xpose.msra.mxu0 %v152
    %221 = vmatprep.subr.mxu0 0.0
    %222 = vmatpush1.xpose.msra.mxu0 %v155
    %223 = vmatprep.subr.mxu0 0.0
    %224 = vmatpush1.xpose.msra.mxu0 %v158
    %225 = vmatprep.subr.mxu0 0.0
    %226 = vmatpush1.xpose.msra.mxu0 %v161
    %227 = vmatprep.mubr.f32.mxu0 0.0
    %228 = vmatmul.mubr.f32.gmra.mrb[0].mxu0 %v62
    %v229 = vpop.f32.mrb[0].mxu0
    %v230 = vadd.f32 0.0, %v229
    %v231 = vpop.f32.mrb[0].mxu0
    %v232 = vadd.f32 0.0, %v231
    %233 = vmatprep.mubr.f32.mxu0 0.0
    %234 = vmatmul.mubr.f32.gmra.mrb[0].mxu0 %v65
    %v235 = vpop.f32.mrb[0].mxu0
    %v236 = vadd.f32 0.0, %v235
    %v237 = vpop.f32.mrb[0].mxu0
    %v238 = vadd.f32 0.0, %v237
    %239 = vdwg.mxu0
    %241 = vset.pattern.permute.xlu0 0
    %242 = vperm.xlu0 %241, %v55
    %v243 = vpop.permute.xlu0 %242
    %246 = vset.pattern.permute.xlu0 0
    %247 = vperm.xlu0 %246, %v56
    %v248 = vpop.permute.xlu0 %247
    %v250 = vmul.f32 %v230, %v243
    %v251 = vmul.f32 %v232, %v243
    %v252 = vmul.f32 %v236, %v248
    %v253 = vmul.f32 %v238, %v248
    %v255 = vlaneseq
    %v256 = vshrl.u32 %v255, 7
    %v257 = vsub.s32 0, %v256
    %v258 = vrot.slane %v57, %v257
    %v259 = vlaneseq
    %v260 = vshrl.u32 %v259, 7
    %v261 = vsub.s32 1, %v260
    %v262 = vrot.slane %v57, %v261
    %v265 = vmul.f32 %v250, %v258
    %v266 = vmul.f32 %v251, %v262
    %v267 = vmul.f32 %v252, %v258
    %v268 = vmul.f32 %v253, %v262
    %v269 = vlaneseq
    %v270 = vand.u32 %v269, 127
    %v271 = vadd.s32 %v270, 128
    %s272 = smul.u32 0, 256
    %v273 = vstv %s272
    %v274 = vsub.s32 %v58, %v273
    %v275 = vsub.s32 %v59, %v273
    %276 = vset.pattern.permute.xlu0 0
    %277 = vperm.xlu0 %276, %v274
    %v278 = vpop.permute.xlu0 %277
    %279 = vset.pattern.permute.xlu0 0
    %280 = vperm.xlu0 %279, %v275
    %v281 = vpop.permute.xlu0 %280
    %vm282 = vcmp.eq.s32.totalorder %v270, %v278
    %vm283 = vcmp.eq.s32.totalorder %v271, %v278
    %vm284 = vcmp.eq.s32.totalorder %v270, %v281
    %vm285 = vcmp.eq.s32.totalorder %v271, %v281
    %v286 = vsel %vm282, %v265, 0.0
    %v287 = vsel %vm283, %v266, 0.0
    %v288 = vsel %vm284, %v267, 0.0
    %v289 = vsel %vm285, %v268, 0.0
    %v290 = vadd.f32 %v286, %v287
    %291 = vadd.xlane.f32.xlu0 %v290
    %v292 = vpop.xlane.xlu0 %291
    %v293 = vadd.f32 %v288, %v289
    %294 = vadd.xlane.f32.xlu0 %v293
    %v295 = vpop.xlane.xlu0 %294
    %v296 = vmul.f32 %v292, %v292
    %v297 = vmul.f32 %v295, %v295
    %v298 = vsub.f32 1.0, %v296
    %v299 = vsub.f32 1.0, %v297
    %v300 = vmax.f32 %v298, 0.0
    %v301 = vmax.f32 %v299, 0.0
    %v302 = vmin.f32 %v300, 1.0
    %v303 = vmin.f32 %v301, 1.0
    %v304 = vrsqrt.pop %v302
    %v305 = vmul.f32 %v302, %v304
    %vm306 = vcmp.eq.f32.partialorder %v302, inf
    %v307 = vsel %vm306, %v302, %v305
    %vm308 = vcmp.eq.f32.partialorder %v302, 0.0
    %v309 = vand.u32 %v302, 2147483648
    %v310 = vsel %vm308, %v309, %v307
    %v311 = vrsqrt.pop %v303
    %v312 = vmul.f32 %v303, %v311
    %vm313 = vcmp.eq.f32.partialorder %v303, inf
    %v314 = vsel %vm313, %v303, %v312
    %vm315 = vcmp.eq.f32.partialorder %v303, 0.0
    %v316 = vand.u32 %v303, 2147483648
    %v317 = vsel %vm315, %v316, %v314
    %v318 = vmul.f32 %v292, 0.87758255
    %v319 = vmul.f32 %v295, 0.87758255
    %v320 = vmul.f32 %v310, 0.47942555
    %v321 = vmul.f32 %v317, 0.47942555
    %v322 = vsub.f32 %v318, %v320
    %v323 = vsub.f32 %v319, %v321
    %vm324 = vcmp.gt.f32.partialorder %v292, -0.87758255
    %vm325 = vcmp.gt.f32.partialorder %v295, -0.87758255
    %v326 = vsub.f32 %v292, 0.23971277
    %v327 = vsub.f32 %v295, 0.23971277
    %v328 = vsel %vm324, %v322, %v326
    %v329 = vsel %vm325, %v323, %v327
    %v330 = vsel %vm282, %v328, %v265
    %v331 = vsel %vm283, %v328, %v266
    %v332 = vsel %vm284, %v329, %v267
    %v333 = vsel %vm285, %v329, %v268
    %v334 = vmul.f32 %v330, 32.0
    %v335 = vmul.f32 %v331, 32.0
    %v336 = vmul.f32 %v332, 32.0
    %v337 = vmul.f32 %v333, 32.0
    %338 = vst [vmem:[#allocation2] sm:$0xff] %v334
    %339 = vst [vmem:[#allocation2 + $0x8] sm:$0xff] %v335
    %340 = vst [vmem:[#allocation2 + $0x10] sm:$0xff] %v336
    %341 = vst [vmem:[#allocation2 + $0x18] sm:$0xff] %v337
    // Predicated region
    $region22: #{tpu_custom_call.1} parent=1 // pred_check
      _
    $region23: #{tpu_custom_call.1} parent=1 // pred_check_branch
      %343 = sbr.rel (0) target = $region25
    $region24: #{tpu_custom_call.1} parent=1 // pred_region
      %s345 = ssub.s32 512, 512
      %346 = vsyncadd [#allocation3], %s345
      %s347 = sshll.u32 [#allocation2], 4
      %s348 = int_to_ptr.vmem [resolvable:$true] %s347
      %353 = dma.vmem_to_hbm [thread:$0]  %s348, 512, %s5, [#allocation3], 256, 256, 16
    $region25: #{tpu_custom_call.1} parent=1 // pred_fallthru
      _
    // Predicated region
    $region26: #{tpu_custom_call.1} parent=1 // pred_check
      _
    $region27: #{tpu_custom_call.1} parent=1 // pred_check_branch
      %355 = sbr.rel (0) target = $region29
    $region28: #{tpu_custom_call.1} parent=1 // pred_region
      %356 = dma.done [#allocation3], 512
    $region29: #{tpu_custom_call.1} parent=1 // pred_fallthru
      _
    %357 = vsyncpa [#allocation3], 1

</llo_original>
